<compile_context>
chip_gen: v5e
topology: v5e:2x2
jax: 0.10.0
libtpu: 0.0.40
codegen_flags: <defaults>
</compile_context>

<pallas_src>
import jax
import jax.numpy as jnp
from jax.experimental import pallas as pl
from jax.experimental.pallas import tpu as pltpu


def get_preprocess_shape(oldh: int, oldw: int, long_side_length: int):
    scale = long_side_length * 1.0 / max(oldh, oldw)
    newh, neww = oldh * scale, oldw * scale
    return int(newh + 0.5), int(neww + 0.5)


def _round_up(x: int, m: int) -> int:
    return (x + m - 1) // m * m


def _bilinear_weight_matrix(new: int, old: int, dtype=jnp.float32):
    """Interpolation matrix matching PyTorch upsample_bilinear2d (align_corners=False)."""
    i = jnp.arange(new, dtype=jnp.float32)
    src = (i + 0.5) * (old / new) - 0.5
    src = jnp.maximum(src, 0.0)                       # PyTorch clamps negative src to 0
    i0 = jnp.clip(jnp.floor(src).astype(jnp.int32), 0, old - 1)
    i1 = jnp.minimum(i0 + 1, old - 1)
    lam = src - i0.astype(jnp.float32)
    w0 = jax.nn.one_hot(i0, old, dtype=jnp.float32) * (1.0 - lam)[:, None]
    w1 = jax.nn.one_hot(i1, old, dtype=jnp.float32) * lam[:, None]
    return (w0 + w1).astype(dtype)                    # (new, old)


def _make_resize_kernel(batch: int, height_first: bool, compute_dtype):
    def kernel(x_ref, wh_ref, wwt_ref, o_ref):
        # x_ref: (B, H, W); wh_ref: (P, H); wwt_ref: (W, Q); o_ref: (B, P, Q)
        wh = wh_ref[...]
        wwt = wwt_ref[...]
        for b in range(batch):                        # small static unroll
            xb = x_ref[b].astype(compute_dtype)
            if height_first:
                t = jnp.dot(wh, xb, preferred_element_type=jnp.float32)          # (P, W)
                out = jnp.dot(t.astype(compute_dtype), wwt,
                              preferred_element_type=jnp.float32)                # (P, Q)
            else:
                t = jnp.dot(xb, wwt, preferred_element_type=jnp.float32)         # (H, Q)
                out = jnp.dot(wh, t.astype(compute_dtype),
                              preferred_element_type=jnp.float32)                # (P, Q)
            o_ref[b] = out.astype(o_ref.dtype)
    return kernel


def resize_longest_side(image: jax.Array, long_side_length: int,
                        interpolation: str = "bilinear",
                        compute_dtype=jnp.bfloat16) -> jax.Array:
    if interpolation != "bilinear":
        # TODO(synk): only bilinear / align_corners=False is implemented in the kernel.
        raise NotImplementedError(f"interpolation={interpolation!r}")
    if not jnp.issubdtype(image.dtype, jnp.floating):
        # TODO(synk): integer (e.g. uint8) inputs need round-to-nearest on output and
        # have no MXU integer path on v7x; convert to float in the caller.
        raise NotImplementedError(f"dtype={image.dtype} not supported")

    N, C, H, W = image.shape
    if max(H, W) == long_side_length:
        return image
    newh, neww = get_preprocess_shape(H, W, long_side_length)

    # Pad output grid: sublane-aligned rows, lane-dense (128-multiple) columns.
    P = _round_up(newh, 8)
    Q = _round_up(neww, 128)

    wh = _bilinear_weight_matrix(newh, H)                                   # (newh, H)
    wh = jnp.pad(wh, ((0, P - newh), (0, 0))).astype(compute_dtype)         # (P, H)
    ww = _bilinear_weight_matrix(neww, W)                                   # (neww, W)
    wwt = jnp.pad(ww, ((0, Q - neww), (0, 0))).T.astype(compute_dtype)      # (W, Q)

    # Static matmul-order selection (padded shapes == actual MXU work).
    cost_hf = P * W * (H + Q)     # (Wh @ x) then (. @ WwT)
    cost_wf = H * Q * (W + P)     # (x @ WwT) then (Wh @ .)
    height_first = cost_hf <= cost_wf

    NC = N * C
    x = image.reshape(NC, H, W)
    x_item = image.dtype.itemsize
    out_item = image.dtype.itemsize
    c_item = jnp.dtype(compute_dtype).itemsize

    # VMEM budgeting (v7x has only 64 MiB/TC; query when possible).
    try:
        vmem_cap = int(pltpu.get_tpu_info().vmem_capacity_bytes)
    except Exception:
        vmem_cap = 64 * 1024 * 1024

    inter_elems = (P * W) if height_first else (H * Q)
    per_plane = (2 * H * W * x_item               # double-buffered input block
                 + 2 * P * Q * out_item           # double-buffered output block
                 + inter_elems * (4 + c_item))    # f32 intermediate + compute-dtype copy
    fixed = 2 * (P * H + W * Q) * c_item          # resident weight matrices
    budget = max(int(0.45 * vmem_cap) - fixed, per_plane)

    # Planes per grid step: largest divisor of NC under budget, capped (unrolled loop),
    # keeping grid >= 2 so "parallel" can use both v7x TensorCores.
    B = 1
    for d in range(1, min(NC, 8) + 1):
        if NC % d:
            continue
        if d * per_plane > budget:
            continue
        if NC >= 2 and NC // d < 2:
            continue
        B = d

    footprint = B * per_plane + fixed
    vmem_limit = int(min(0.9 * vmem_cap, max(32 * 1024 * 1024, 2 * footprint)))

    flops = 2 * NC * (cost_hf if height_first else cost_wf)
    bytes_accessed = (NC * H * W * x_item + NC * P * Q * out_item
                      + (P * H + W * Q) * c_item)

    kernel = _make_resize_kernel(B, height_first, compute_dtype)
    out_padded = pl.pallas_call(
        kernel,
        out_shape=jax.ShapeDtypeStruct((NC, P, Q), image.dtype),
        grid_spec=pltpu.PrefetchScalarGridSpec(
            num_scalar_prefetch=0,
            grid=(NC // B,),
            in_specs=[
                pl.BlockSpec((B, H, W), lambda i: (i, 0, 0)),
                pl.BlockSpec((P, H), lambda i: (0, 0)),
                pl.BlockSpec((W, Q), lambda i: (0, 0)),
            ],
            out_specs=pl.BlockSpec((B, P, Q), lambda i: (i, 0, 0)),
        ),
        compiler_params=pltpu.CompilerParams(
            dimension_semantics=("parallel",),
            vmem_limit_bytes=vmem_limit,
        ),
        cost_estimate=pl.CostEstimate(
            flops=flops, transcendentals=0, bytes_accessed=bytes_accessed),
    )(x, wh, wwt)

    # TODO(synk): for very large planes, add a W-tiled (extra "arbitrary" grid axis +
    # f32 accumulator) path and a banded-weight formulation to cut VMEM/MXU work.
    out = out_padded if (P == newh and Q == neww) else out_padded[:, :newh, :neww]
    return out.reshape(N, C, newh, neww)


if __name__ == "__main__":
    key = jax.random.PRNGKey(0)
    N, C, H, W = 2, 4, 16, 12
    long_side = 32                     # ResizeLongestSide(long_side_length=32, "bilinear")
    image = jax.random.normal(key, (N, C, H, W), dtype=jnp.float32)

    out = resize_longest_side(image, long_side, "bilinear")
    out = jax.block_until_ready(out)

    # Dense JAX reference built from the same (f32) separable weights.
    newh, neww = get_preprocess_shape(H, W, long_side)
    wh_ref = _bilinear_weight_matrix(newh, H)
    ww_ref = _bilinear_weight_matrix(neww, W)
    ref = jnp.einsum("ph,nchw,qw->ncpq", wh_ref, image, ww_ref)

    assert out.shape == (N, C, newh, neww), out.shape
    assert out.dtype == image.dtype
    # Default path uses bf16 MXU operands with f32 accumulation -> loose tolerance.
    assert jnp.allclose(out, ref, atol=5e-2, rtol=5e-2), \
        float(jnp.max(jnp.abs(out - ref)))

    # f32 compute path matches the reference tightly (also exercises f32 lowering).
    out_f32 = resize_longest_side(image, long_side, "bilinear",
                                  compute_dtype=jnp.float32)
    out_f32 = jax.block_until_ready(out_f32)
    assert jnp.allclose(out_f32, ref, atol=1e-5, rtol=1e-5)

    print("KERNEL_OK")
</pallas_src>

<mosaic_0001>
module attributes {stable_mosaic.version = 11 : i64} {
  func.func @kernel(%arg0: i32, %arg1: memref<4x16x12xf32, #tpu.memory_space<vmem>>, %arg2: memref<32x16xbf16, #tpu.memory_space<vmem>>, %arg3: memref<12x128xbf16, #tpu.memory_space<vmem>>, %arg4: memref<4x32x128xf32, #tpu.memory_space<vmem>>) attributes {dimension_semantics = [#tpu.dimension_semantics<parallel>], iteration_bounds = array<i64: 2>, scalar_prefetch = 0 : i64, scratch_operands = 0 : i64, tpu.core_type = #tpu.core_type<tc>, window_params = [{transform_indices = @transform_0, window_bounds = array<i64: 4, 16, 12>}, {pipeline_mode = #tpu.pipeline_mode<synchronous>, transform_indices = @transform_1, window_bounds = array<i64: 32, 16>}, {pipeline_mode = #tpu.pipeline_mode<synchronous>, transform_indices = @transform_2, window_bounds = array<i64: 12, 128>}, {transform_indices = @transform_3, window_bounds = array<i64: 4, 32, 128>}]} {
    %c0 = arith.constant 0 : index
    %c0_0 = arith.constant 0 : index
    %0 = vector.load %arg2[%c0, %c0_0] : memref<32x16xbf16, #tpu.memory_space<vmem>>, vector<32x16xbf16>
    %c0_1 = arith.constant 0 : index
    %c0_2 = arith.constant 0 : index
    %1 = vector.load %arg3[%c0_1, %c0_2] : memref<12x128xbf16, #tpu.memory_space<vmem>>, vector<12x128xbf16>
    %c0_3 = arith.constant 0 : index
    %c0_4 = arith.constant 0 : index
    %c0_5 = arith.constant 0 : index
    %2 = vector.load %arg1[%c0_3, %c0_4, %c0_5] : memref<4x16x12xf32, #tpu.memory_space<vmem>>, vector<1x16x12xf32>
    %3 = vector.shape_cast %2 : vector<1x16x12xf32> to vector<16x12xf32>
    %4 = arith.truncf %3 : vector<16x12xf32> to vector<16x12xbf16>
    %cst = arith.constant dense<0.000000e+00> : vector<32x12xf32>
    %5 = tpu.matmul %0, %4, %cst {dimension_numbers = #tpu.dot_dimension_numbers<[1], [0], [0], [1], [0, 0, 1, 1], [], []>} : vector<32x16xbf16>, vector<16x12xbf16>, vector<32x12xf32> -> vector<32x12xf32>
    %6 = arith.truncf %5 : vector<32x12xf32> to vector<32x12xbf16>
    %cst_6 = arith.constant dense<0.000000e+00> : vector<32x128xf32>
    %7 = tpu.matmul %6, %1, %cst_6 {dimension_numbers = #tpu.dot_dimension_numbers<[1], [0], [0], [1], [0, 0, 1, 1], [], []>} : vector<32x12xbf16>, vector<12x128xbf16>, vector<32x128xf32> -> vector<32x128xf32>
    %c0_7 = arith.constant 0 : index
    %c0_8 = arith.constant 0 : index
    %c0_9 = arith.constant 0 : index
    %8 = vector.load %arg4[%c0_7, %c0_8, %c0_9] : memref<4x32x128xf32, #tpu.memory_space<vmem>>, vector<1x32x128xf32>
    %9 = vector.shape_cast %8 : vector<1x32x128xf32> to vector<32x128xf32>
    %10 = vector.shape_cast %7 : vector<32x128xf32> to vector<1x32x128xf32>
    tpu.vector_store %arg4[%c0_7, %c0_8, %c0_9], %10 {strides = array<i32>} : memref<4x32x128xf32, #tpu.memory_space<vmem>>, vector<1x32x128xf32>,
    %c1 = arith.constant 1 : index
    %c0_10 = arith.constant 0 : index
    %c0_11 = arith.constant 0 : index
    %11 = vector.load %arg1[%c1, %c0_10, %c0_11] : memref<4x16x12xf32, #tpu.memory_space<vmem>>, vector<1x16x12xf32>
    %12 = vector.shape_cast %11 : vector<1x16x12xf32> to vector<16x12xf32>
    %13 = arith.truncf %12 : vector<16x12xf32> to vector<16x12xbf16>
    %cst_12 = arith.constant dense<0.000000e+00> : vector<32x12xf32>
    %14 = tpu.matmul %0, %13, %cst_12 {dimension_numbers = #tpu.dot_dimension_numbers<[1], [0], [0], [1], [0, 0, 1, 1], [], []>} : vector<32x16xbf16>, vector<16x12xbf16>, vector<32x12xf32> -> vector<32x12xf32>
    %15 = arith.truncf %14 : vector<32x12xf32> to vector<32x12xbf16>
    %cst_13 = arith.constant dense<0.000000e+00> : vector<32x128xf32>
    %16 = tpu.matmul %15, %1, %cst_13 {dimension_numbers = #tpu.dot_dimension_numbers<[1], [0], [0], [1], [0, 0, 1, 1], [], []>} : vector<32x12xbf16>, vector<12x128xbf16>, vector<32x128xf32> -> vector<32x128xf32>
    %c1_14 = arith.constant 1 : index
    %c0_15 = arith.constant 0 : index
    %c0_16 = arith.constant 0 : index
    %17 = vector.load %arg4[%c1_14, %c0_15, %c0_16] : memref<4x32x128xf32, #tpu.memory_space<vmem>>, vector<1x32x128xf32>
    %18 = vector.shape_cast %17 : vector<1x32x128xf32> to vector<32x128xf32>
    %19 = vector.shape_cast %16 : vector<32x128xf32> to vector<1x32x128xf32>
    tpu.vector_store %arg4[%c1_14, %c0_15, %c0_16], %19 {strides = array<i32>} : memref<4x32x128xf32, #tpu.memory_space<vmem>>, vector<1x32x128xf32>,
    %c2 = arith.constant 2 : index
    %c0_17 = arith.constant 0 : index
    %c0_18 = arith.constant 0 : index
    %20 = vector.load %arg1[%c2, %c0_17, %c0_18] : memref<4x16x12xf32, #tpu.memory_space<vmem>>, vector<1x16x12xf32>
    %21 = vector.shape_cast %20 : vector<1x16x12xf32> to vector<16x12xf32>
    %22 = arith.truncf %21 : vector<16x12xf32> to vector<16x12xbf16>
    %cst_19 = arith.constant dense<0.000000e+00> : vector<32x12xf32>
    %23 = tpu.matmul %0, %22, %cst_19 {dimension_numbers = #tpu.dot_dimension_numbers<[1], [0], [0], [1], [0, 0, 1, 1], [], []>} : vector<32x16xbf16>, vector<16x12xbf16>, vector<32x12xf32> -> vector<32x12xf32>
    %24 = arith.truncf %23 : vector<32x12xf32> to vector<32x12xbf16>
    %cst_20 = arith.constant dense<0.000000e+00> : vector<32x128xf32>
    %25 = tpu.matmul %24, %1, %cst_20 {dimension_numbers = #tpu.dot_dimension_numbers<[1], [0], [0], [1], [0, 0, 1, 1], [], []>} : vector<32x12xbf16>, vector<12x128xbf16>, vector<32x128xf32> -> vector<32x128xf32>
    %c2_21 = arith.constant 2 : index
    %c0_22 = arith.constant 0 : index
    %c0_23 = arith.constant 0 : index
    %26 = vector.load %arg4[%c2_21, %c0_22, %c0_23] : memref<4x32x128xf32, #tpu.memory_space<vmem>>, vector<1x32x128xf32>
    %27 = vector.shape_cast %26 : vector<1x32x128xf32> to vector<32x128xf32>
    %28 = vector.shape_cast %25 : vector<32x128xf32> to vector<1x32x128xf32>
    tpu.vector_store %arg4[%c2_21, %c0_22, %c0_23], %28 {strides = array<i32>} : memref<4x32x128xf32, #tpu.memory_space<vmem>>, vector<1x32x128xf32>,
    %c3 = arith.constant 3 : index
    %c0_24 = arith.constant 0 : index
    %c0_25 = arith.constant 0 : index
    %29 = vector.load %arg1[%c3, %c0_24, %c0_25] : memref<4x16x12xf32, #tpu.memory_space<vmem>>, vector<1x16x12xf32>
    %30 = vector.shape_cast %29 : vector<1x16x12xf32> to vector<16x12xf32>
    %31 = arith.truncf %30 : vector<16x12xf32> to vector<16x12xbf16>
    %cst_26 = arith.constant dense<0.000000e+00> : vector<32x12xf32>
    %32 = tpu.matmul %0, %31, %cst_26 {dimension_numbers = #tpu.dot_dimension_numbers<[1], [0], [0], [1], [0, 0, 1, 1], [], []>} : vector<32x16xbf16>, vector<16x12xbf16>, vector<32x12xf32> -> vector<32x12xf32>
    %33 = arith.truncf %32 : vector<32x12xf32> to vector<32x12xbf16>
    %cst_27 = arith.constant dense<0.000000e+00> : vector<32x128xf32>
    %34 = tpu.matmul %33, %1, %cst_27 {dimension_numbers = #tpu.dot_dimension_numbers<[1], [0], [0], [1], [0, 0, 1, 1], [], []>} : vector<32x12xbf16>, vector<12x128xbf16>, vector<32x128xf32> -> vector<32x128xf32>
    %c3_28 = arith.constant 3 : index
    %c0_29 = arith.constant 0 : index
    %c0_30 = arith.constant 0 : index
    %35 = vector.load %arg4[%c3_28, %c0_29, %c0_30] : memref<4x32x128xf32, #tpu.memory_space<vmem>>, vector<1x32x128xf32>
    %36 = vector.shape_cast %35 : vector<1x32x128xf32> to vector<32x128xf32>
    %37 = vector.shape_cast %34 : vector<32x128xf32> to vector<1x32x128xf32>
    tpu.vector_store %arg4[%c3_28, %c0_29, %c0_30], %37 {strides = array<i32>} : memref<4x32x128xf32, #tpu.memory_space<vmem>>, vector<1x32x128xf32>,
    return
  }
  func.func @transform_0(%arg0: i32) -> (i32, i32, i32) {
    %c0_i32 = arith.constant 0 : i32
    %c0_i32_0 = arith.constant 0 : i32
    %c0_i32_1 = arith.constant 0 : i32
    return %arg0, %c0_i32, %c0_i32_0 : i32, i32, i32
  }
  func.func @transform_1(%arg0: i32) -> (i32, i32) {
    %c0_i32 = arith.constant 0 : i32
    %c0_i32_0 = arith.constant 0 : i32
    %c0_i32_1 = arith.constant 0 : i32
    return %c0_i32, %c0_i32_0 : i32, i32
  }
  func.func @transform_2(%arg0: i32) -> (i32, i32) {
    %c0_i32 = arith.constant 0 : i32
    %c0_i32_0 = arith.constant 0 : i32
    %c0_i32_1 = arith.constant 0 : i32
    return %c0_i32, %c0_i32_0 : i32, i32
  }
  func.func @transform_3(%arg0: i32) -> (i32, i32, i32) {
    %c0_i32 = arith.constant 0 : i32
    %c0_i32_0 = arith.constant 0 : i32
    %c0_i32_1 = arith.constant 0 : i32
    return %arg0, %c0_i32, %c0_i32_0 : i32, i32, i32
  }
}

</mosaic_0001>

<llo_original>
// kernel: tpu_custom_call.1
$region0: #{tpu_custom_call.1}
  #allocation0 [shape = 'u32[]', space=smem, size = 0x4, offset = 0x4, fixed_abs, tag = 'smem constant byte address 0x4 - core index']
  #allocation1 [shape = 'u32[72,128]{1,0:T(1,128)}', space=vmem, size = 0x9000, scoped, tag = 'internal scratch']
  %s0 = inlined_call_operand.vmem [shape: f32[8,16,12], index: 0, kind: input, shape index: {}]
  %s1 = inlined_call_operand.vmem [shape: bf16[32,16], index: 1, kind: input, shape index: {}]
  %s2 = inlined_call_operand.vmem [shape: bf16[12,128], index: 2, kind: input, shape index: {}]
  %s3 = inlined_call_operand.hbm [shape: f32[8,32,128], index: 3, kind: output, shape index: {}]
  %s4 = sld [smem:[#allocation0]]
  $region45: #{tpu_custom_call.1} parent=0
    _
  %s6 = ssub.s32 1, %s4
  %s7 = scalar_select 0, %s6, %s4
  $region1: #{tpu_custom_call.1} parent=0
    #allocation2 [shape = 'u8[131072]{0}', space=vmem, size = 0x20000, scoped, tag = 'output window, operand 0']
    #allocation3 [shape = 's32[2]{0}', space=sflag, size = 0x8, scoped, tag = 'scoped memory for tpu_custom_call.1']
    %8 = vsyncpa [#allocation3], 0
    %s9 = scalar_lea.sflag [#allocation3], 1
    %10 = vsyncpa %s9, 0
    loop: start=0, step=1, limit=4
    $region2: #{tpu_custom_call.1} parent=1 // loop_pre_header
      _
    $region3: #{tpu_custom_call.1} parent=1 // loop_header
      %s12 = sphi 0, %s16
      %p13 = scmp.ge.s32.totalorder %s12, 4
      %s22 = sphi 0, %s24
      %s25 = sphi 0, %s22
      %s26 = sphi 0, %s25
      %s42 = sphi 0, %s26
      %s46 = sphi 0, %s46
      %s48 = sphi 0, %s46
      %s49 = sphi 0, %s48
      %s63 = sphi 0, %s49
      %s67 = sphi 0, %s67
      %s69 = sphi 0, %s67
      %s70 = sphi 0, %s69
      %s84 = sphi 0, %s70
      %s90 = sphi 0, %s92
      %s93 = sphi 0, %s90
      %s94 = sphi 0, %s93
      %s110 = sphi 0, %s94
    $region4: #{tpu_custom_call.1} parent=1 // loop_header_branch
      %15 = sbr.rel (%p13) target = $region8
    $region5: #{tpu_custom_call.1} parent=1 // loop_body
      %s17 = ssub.s32 %s12, 1
      %s18 = ssub.s32 %s12, 2
      %s19 = sadd.s32 %s12, 1
      %s20 = ssub.s32 %s12, %s19
      %p21 = scmp.eq.s32.totalorder %s20, 0
      %s23 = sadd.s32 %s22, 1
      %s24 = scalar_select %p21, %s22, %s23
      %p27 = pneg %p21
      %p28 = scmp.eq.s32.totalorder %s12, 1
      %p29 = por %p27, %p28
      %p30 = scmp.ne.s32.totalorder %s22, %s25
      %p31 = scmp.eq.s32.totalorder %s12, 0
      %p32 = por %p30, %p31
      %p33 = scmp.ne.s32.totalorder %s22, %s25
      %p34 = scmp.eq.s32.totalorder %s17, 1
      %p35 = por %p33, %p34
      %p36 = scmp.ne.s32.totalorder %s25, %s26
      %p37 = scmp.eq.s32.totalorder %s17, 0
      %p38 = por %p36, %p37
      %p39 = scmp.ne.s32.totalorder %s25, %s26
      %p40 = scmp.eq.s32.totalorder %s18, 1
      %p41 = por %p39, %p40
      %p43 = scmp.ne.s32.totalorder %s26, %s42
      %p44 = scmp.eq.s32.totalorder %s18, 0
      %p45 = por %p43, %p44
      %s47 = sadd.s32 %s46, 1
      %p50 = scmp.eq.s32.totalorder %s12, 1
      %p51 = scmp.ne.s32.totalorder %s46, %s48
      %p52 = scmp.eq.s32.totalorder %s12, 0
      %p53 = por %p51, %p52
      %p54 = scmp.ne.s32.totalorder %s46, %s48
      %p55 = scmp.eq.s32.totalorder %s17, 1
      %p56 = por %p54, %p55
      %p57 = scmp.ne.s32.totalorder %s48, %s49
      %p58 = scmp.eq.s32.totalorder %s17, 0
      %p59 = por %p57, %p58
      %p60 = scmp.ne.s32.totalorder %s48, %s49
      %p61 = scmp.eq.s32.totalorder %s18, 1
      %p62 = por %p60, %p61
      %p64 = scmp.ne.s32.totalorder %s49, %s63
      %p65 = scmp.eq.s32.totalorder %s18, 0
      %p66 = por %p64, %p65
      %s68 = sadd.s32 %s67, 1
      %p71 = scmp.eq.s32.totalorder %s12, 1
      %p72 = scmp.ne.s32.totalorder %s67, %s69
      %p73 = scmp.eq.s32.totalorder %s12, 0
      %p74 = por %p72, %p73
      %p75 = scmp.ne.s32.totalorder %s67, %s69
      %p76 = scmp.eq.s32.totalorder %s17, 1
      %p77 = por %p75, %p76
      %p78 = scmp.ne.s32.totalorder %s69, %s70
      %p79 = scmp.eq.s32.totalorder %s17, 0
      %p80 = por %p78, %p79
      %p81 = scmp.ne.s32.totalorder %s69, %s70
      %p82 = scmp.eq.s32.totalorder %s18, 1
      %p83 = por %p81, %p82
      %p85 = scmp.ne.s32.totalorder %s70, %s84
      %p86 = scmp.eq.s32.totalorder %s18, 0
      %p87 = por %p85, %p86
      %s88 = ssub.s32 %s12, %s19
      %p89 = scmp.eq.s32.totalorder %s88, 0
      %s91 = sadd.s32 %s90, 1
      %s92 = scalar_select %p89, %s90, %s91
      %p95 = pneg %p89
      %p96 = scmp.eq.s32.totalorder %s12, 1
      %p97 = por %p95, %p96
      %p98 = scmp.ne.s32.totalorder %s90, %s93
      %p99 = scmp.eq.s32.totalorder %s12, 0
      %p100 = por %p98, %p99
      %p101 = scmp.ne.s32.totalorder %s90, %s93
      %p102 = scmp.eq.s32.totalorder %s17, 1
      %p103 = por %p101, %p102
      %p104 = scmp.ne.s32.totalorder %s93, %s94
      %p105 = scmp.eq.s32.totalorder %s17, 0
      %p106 = por %p104, %p105
      %p107 = scmp.ne.s32.totalorder %s93, %s94
      %p108 = scmp.eq.s32.totalorder %s18, 1
      %p109 = por %p107, %p108
      %p111 = scmp.ne.s32.totalorder %s94, %s110
      %p112 = scmp.eq.s32.totalorder %s18, 0
      %p113 = por %p111, %p112
      %p114 = scmp.le.s32.totalorder 1, %s12
      %p115 = scmp.lt.s32.totalorder %s12, 3
      %p116 = pnand %p114, %p115
      %p117 = pneg %p116
      // Predicated region
      $region9: #{tpu_custom_call.1} parent=5 // pred_check
        _
      $region10: #{tpu_custom_call.1} parent=5 // pred_check_branch
        %119 = sbr.rel (%p116) target = $region12
      $region11: #{tpu_custom_call.1} parent=5 // pred_region
        %s120 = ssub.s32 %s12, 1
        // Predicated region
        $region13: #{tpu_custom_call.1} parent=11 // pred_check
          %p121 = pneg %p59
        $region14: #{tpu_custom_call.1} parent=11 // pred_check_branch
          %123 = sbr.rel (%p121) target = $region16
        $region15: #{tpu_custom_call.1} parent=11 // pred_region
          _
        $region16: #{tpu_custom_call.1} parent=11 // pred_fallthru
          _
        // Predicated region
        $region17: #{tpu_custom_call.1} parent=11 // pred_check
          %p124 = pneg %p80
        $region18: #{tpu_custom_call.1} parent=11 // pred_check_branch
          %126 = sbr.rel (%p124) target = $region20
        $region19: #{tpu_custom_call.1} parent=11 // pred_region
          _
        $region20: #{tpu_custom_call.1} parent=11 // pred_fallthru
          _
      $region12: #{tpu_custom_call.1} parent=5 // pred_fallthru
        _
      %p127 = scmp.lt.s32.totalorder %s12, 2
      // Predicated region
      $region21: #{tpu_custom_call.1} parent=5 // pred_check
        %p128 = pneg %p127
      $region22: #{tpu_custom_call.1} parent=5 // pred_check_branch
        %130 = sbr.rel (%p128) target = $region24
      $region23: #{tpu_custom_call.1} parent=5 // pred_region
        // Predicated region
        $region25: #{tpu_custom_call.1} parent=23 // pred_check
          %p131 = pneg %p32
        $region26: #{tpu_custom_call.1} parent=23 // pred_check_branch
          %133 = sbr.rel (%p131) target = $region28
        $region27: #{tpu_custom_call.1} parent=23 // pred_region
          %s134 = smul.u32 4, %s12
          %p135 = scmp.lt.s32.totalorder %s134, 7
          %s136 = scalar_select %p135, %s134, 7
          %s137 = smul.addr %s136, 2
          %s138 = smul.addr %s137, 8
          %s139 = scalar_lea.vmem %s0, %s138
          %s140 = smul.u32 4, %s12
        $region28: #{tpu_custom_call.1} parent=23 // pred_fallthru
          _
      $region24: #{tpu_custom_call.1} parent=5 // pred_fallthru
        _
      %p141 = scmp.le.s32.totalorder 1, %s12
      %p142 = scmp.lt.s32.totalorder %s12, 3
      %p143 = pnand %p141, %p142
      %p144 = pneg %p143
      // Predicated region
      $region29: #{tpu_custom_call.1} parent=5 // pred_check
        _
      $region30: #{tpu_custom_call.1} parent=5 // pred_check_branch
        %146 = sbr.rel (%p143) target = $region32
      $region31: #{tpu_custom_call.1} parent=5 // pred_region
        %s147 = ssub.s32 %s12, 1
        %s148 = smul.u32 4, %s17
        %p149 = scmp.lt.s32.totalorder %s148, 7
        %s150 = scalar_select %p149, %s148, 7
        %s151 = smul.addr %s150, 2
        %s152 = smul.addr %s151, 8
        %s153 = scalar_lea.vmem %s0, %s152
        %p154 = pneg %p38
        %p155 = pneg %p35
        %p156 = pneg %p59
        %p157 = pneg %p56
        %p158 = pneg %p80
        %p159 = pneg %p77
        %p160 = pneg %p106
        %p161 = pneg %p103
        %s162 = sand.u32 %s93, 1
        %s163 = scalar_lea.sflag [#allocation3], %s162
        %s164 = sand.u32 %s93, 1
        %s165 = smul.addr %s164, 128
        %s166 = scalar_lea.vmem [#allocation2], %s165
        %s167 = smul.u32 4, %s17
        %p168 = scmp.lt.s32.totalorder %s167, 7
        %s169 = scalar_select %p168, %s167, 7
        %s170 = smul.addr %s169, 2
        %s171 = smul.addr %s170, 8
        %s172 = scalar_lea.vmem %s0, %s171
        %s173 = smul.u32 4, %s17
        %s174 = smul.u32 4, %s17
        %v176 = vld [vmem:[%s1] sm:$0xf]
        %v177 = vld [vmem:[%s1 + $0x4] sm:$0xf]
        %v178 = vld [vmem:[%s1 + $0x8] sm:$0xf]
        %v179 = vld [vmem:[%s1 + $0xc] sm:$0xf]
        %v180 = vld [vmem:[%s2] sm:$0xf]
        %v181 = vld [vmem:[%s2 + $0x4] sm:$0x3]
        %v182 = vld [vmem:[%s172] sm:$0xff]
        %v183 = vld [vmem:[%s172 + $0x8] sm:$0xff]
        %v184 = vpack.c.bf16 %v183, %v182
        %v189 = vunpack.c.l.b16 %v176
        %v190 = vunpack.c.l.b16 %v177
        %v191 = vunpack.c.l.b16 %v178
        %v192 = vunpack.c.l.b16 %v179
        %v193 = vpack.c.b16 %v190, %v189
        %v194 = vpack.c.b16 %v192, %v191
        %vm195 = vcmask 130048
        %v197 = vsel %vm195, %v193, 0
        %v200 = vsel %vm195, %v194, 0
        %202 = vmatpush.bf16.msra.mxu0 0
        %203 = vmatpush.bf16.msra.mxu0 0
        %204 = vmatpush.bf16.msra.mxu0 0
        %205 = vmatpush.bf16.msra.mxu0 0
        %206 = vmatpush.bf16.msra.mxu0 0
        %207 = vmatpush.bf16.msra.mxu0 0
        %208 = vmatpush.bf16.msra.mxu0 0
        %209 = vmatpush.bf16.msra.mxu0 %v184
        %210 = vmatmul.bf16.gmra.mxu0 %v197
        %v211 = vpop.f32.mrf.mxu0
        %v212 = vadd.f32 0.0, %v211
        %v213 = vpop.f32.mrf.mxu0
        %v214 = vadd.f32 0.0, %v213
        %215 = vmatmul.bf16.gmra.mxu0 %v200
        %v216 = vpop.f32.mrf.mxu0
        %v217 = vadd.f32 0.0, %v216
        %v218 = vpop.f32.mrf.mxu0
        %v219 = vadd.f32 0.0, %v218
        %220 = vdwg.mxu0
        %v221 = vpack.c.bf16 %v214, %v212
        %v222 = vpack.c.bf16 %v219, %v217
        %v225 = vunpack.c.l.b16 %v180
        %v226 = vunpack.c.l.b16 %v181
        %v227 = vpack.c.b16 %v226, %v225
        %vm228 = vcmask 97280
        %v230 = vsel %vm228, %v221, 0
        %v233 = vsel %vm228, %v222, 0
        %vm235 = vcmask 1045504
        %v237 = vsel %vm235, %v227, 0
        %239 = vmatpush.bf16.msra.mxu0 0
        %240 = vmatpush.bf16.msra.mxu0 0
        %241 = vmatpush.bf16.msra.mxu0 0
        %242 = vmatpush.bf16.msra.mxu0 0
        %243 = vmatpush.bf16.msra.mxu0 0
        %244 = vmatpush.bf16.msra.mxu0 0
        %245 = vmatpush.bf16.msra.mxu0 0
        %246 = vmatpush.bf16.msra.mxu0 %v237
        %247 = vmatmul.bf16.gmra.mxu0 %v230
        %v248 = vpop.f32.mrf.mxu0
        %v249 = vadd.f32 0.0, %v248
        %v250 = vpop.f32.mrf.mxu0
        %v251 = vadd.f32 0.0, %v250
        %252 = vmatmul.bf16.gmra.mxu0 %v233
        %v253 = vpop.f32.mrf.mxu0
        %v254 = vadd.f32 0.0, %v253
        %v255 = vpop.f32.mrf.mxu0
        %v256 = vadd.f32 0.0, %v255
        %257 = vdwg.mxu0
        %258 = vst [vmem:[%s166] sm:$0xff] %v249
        %259 = vst [vmem:[%s166 + $0x8] sm:$0xff] %v251
        %260 = vst [vmem:[%s166 + $0x10] sm:$0xff] %v254
        %261 = vst [vmem:[%s166 + $0x18] sm:$0xff] %v256
        %s262 = scalar_lea.vmem %s172, 16
        %v263 = vld [vmem:[%s262] sm:$0xff]
        %v264 = vld [vmem:[%s262 + $0x8] sm:$0xff]
        %v265 = vpack.c.bf16 %v264, %v263
        %266 = vmatpush.bf16.msra.mxu0 0
        %267 = vmatpush.bf16.msra.mxu0 0
        %268 = vmatpush.bf16.msra.mxu0 0
        %269 = vmatpush.bf16.msra.mxu0 0
        %270 = vmatpush.bf16.msra.mxu0 0
        %271 = vmatpush.bf16.msra.mxu0 0
        %272 = vmatpush.bf16.msra.mxu0 0
        %273 = vmatpush.bf16.msra.mxu0 %v265
        %274 = vmatmul.bf16.gmra.mxu0 %v197
        %v275 = vpop.f32.mrf.mxu0
        %v276 = vadd.f32 0.0, %v275
        %v277 = vpop.f32.mrf.mxu0
        %v278 = vadd.f32 0.0, %v277
        %279 = vmatmul.bf16.gmra.mxu0 %v200
        %v280 = vpop.f32.mrf.mxu0
        %v281 = vadd.f32 0.0, %v280
        %v282 = vpop.f32.mrf.mxu0
        %v283 = vadd.f32 0.0, %v282
        %284 = vdwg.mxu0
        %v285 = vpack.c.bf16 %v278, %v276
        %v286 = vpack.c.bf16 %v283, %v281
        %v288 = vsel %vm228, %v285, 0
        %v291 = vsel %vm228, %v286, 0
        %293 = vmatpush.bf16.msra.mxu0 0
        %294 = vmatpush.bf16.msra.mxu0 0
        %295 = vmatpush.bf16.msra.mxu0 0
        %296 = vmatpush.bf16.msra.mxu0 0
        %297 = vmatpush.bf16.msra.mxu0 0
        %298 = vmatpush.bf16.msra.mxu0 0
        %299 = vmatpush.bf16.msra.mxu0 0
        %300 = vmatpush.bf16.msra.mxu0 %v237
        %301 = vmatmul.bf16.gmra.mxu0 %v288
        %v302 = vpop.f32.mrf.mxu0
        %v303 = vadd.f32 0.0, %v302
        %v304 = vpop.f32.mrf.mxu0
        %v305 = vadd.f32 0.0, %v304
        %306 = vmatmul.bf16.gmra.mxu0 %v291
        %v307 = vpop.f32.mrf.mxu0
        %v308 = vadd.f32 0.0, %v307
        %v309 = vpop.f32.mrf.mxu0
        %v310 = vadd.f32 0.0, %v309
        %311 = vdwg.mxu0
        %s312 = scalar_lea.vmem %s166, 32 [#allocation2]
        %313 = vst [vmem:[%s312] sm:$0xff] %v303
        %314 = vst [vmem:[%s312 + $0x8] sm:$0xff] %v305
        %315 = vst [vmem:[%s312 + $0x10] sm:$0xff] %v308
        %316 = vst [vmem:[%s312 + $0x18] sm:$0xff] %v310
        %s317 = scalar_lea.vmem %s172, 32
        %v318 = vld [vmem:[%s317] sm:$0xff]
        %v319 = vld [vmem:[%s317 + $0x8] sm:$0xff]
        %v320 = vpack.c.bf16 %v319, %v318
        %321 = vmatpush.bf16.msra.mxu0 0
        %322 = vmatpush.bf16.msra.mxu0 0
        %323 = vmatpush.bf16.msra.mxu0 0
        %324 = vmatpush.bf16.msra.mxu0 0
        %325 = vmatpush.bf16.msra.mxu0 0
        %326 = vmatpush.bf16.msra.mxu0 0
        %327 = vmatpush.bf16.msra.mxu0 0
        %328 = vmatpush.bf16.msra.mxu0 %v320
        %329 = vmatmul.bf16.gmra.mxu0 %v197
        %v330 = vpop.f32.mrf.mxu0
        %v331 = vadd.f32 0.0, %v330
        %v332 = vpop.f32.mrf.mxu0
        %v333 = vadd.f32 0.0, %v332
        %334 = vmatmul.bf16.gmra.mxu0 %v200
        %v335 = vpop.f32.mrf.mxu0
        %v336 = vadd.f32 0.0, %v335
        %v337 = vpop.f32.mrf.mxu0
        %v338 = vadd.f32 0.0, %v337
        %339 = vdwg.mxu0
        %v340 = vpack.c.bf16 %v333, %v331
        %v341 = vpack.c.bf16 %v338, %v336
        %v343 = vsel %vm228, %v340, 0
        %v346 = vsel %vm228, %v341, 0
        %348 = vmatpush.bf16.msra.mxu0 0
        %349 = vmatpush.bf16.msra.mxu0 0
        %350 = vmatpush.bf16.msra.mxu0 0
        %351 = vmatpush.bf16.msra.mxu0 0
        %352 = vmatpush.bf16.msra.mxu0 0
        %353 = vmatpush.bf16.msra.mxu0 0
        %354 = vmatpush.bf16.msra.mxu0 0
        %355 = vmatpush.bf16.msra.mxu0 %v237
        %356 = vmatmul.bf16.gmra.mxu0 %v343
        %v357 = vpop.f32.mrf.mxu0
        %v358 = vadd.f32 0.0, %v357
        %v359 = vpop.f32.mrf.mxu0
        %v360 = vadd.f32 0.0, %v359
        %361 = vmatmul.bf16.gmra.mxu0 %v346
        %v362 = vpop.f32.mrf.mxu0
        %v363 = vadd.f32 0.0, %v362
        %v364 = vpop.f32.mrf.mxu0
        %v365 = vadd.f32 0.0, %v364
        %366 = vdwg.mxu0
        %s367 = scalar_lea.vmem %s166, 64 [#allocation2]
        %368 = vst [vmem:[%s367] sm:$0xff] %v358
        %369 = vst [vmem:[%s367 + $0x8] sm:$0xff] %v360
        %370 = vst [vmem:[%s367 + $0x10] sm:$0xff] %v363
        %371 = vst [vmem:[%s367 + $0x18] sm:$0xff] %v365
        %s372 = scalar_lea.vmem %s172, 48
        %v373 = vld [vmem:[%s372] sm:$0xff]
        %v374 = vld [vmem:[%s372 + $0x8] sm:$0xff]
        %v375 = vpack.c.bf16 %v374, %v373
        %376 = vmatpush.bf16.msra.mxu0 0
        %377 = vmatpush.bf16.msra.mxu0 0
        %378 = vmatpush.bf16.msra.mxu0 0
        %379 = vmatpush.bf16.msra.mxu0 0
        %380 = vmatpush.bf16.msra.mxu0 0
        %381 = vmatpush.bf16.msra.mxu0 0
        %382 = vmatpush.bf16.msra.mxu0 0
        %383 = vmatpush.bf16.msra.mxu0 %v375
        %384 = vmatmul.bf16.gmra.mxu0 %v197
        %v385 = vpop.f32.mrf.mxu0
        %v386 = vadd.f32 0.0, %v385
        %v387 = vpop.f32.mrf.mxu0
        %v388 = vadd.f32 0.0, %v387
        %389 = vmatmul.bf16.gmra.mxu0 %v200
        %v390 = vpop.f32.mrf.mxu0
        %v391 = vadd.f32 0.0, %v390
        %v392 = vpop.f32.mrf.mxu0
        %v393 = vadd.f32 0.0, %v392
        %394 = vdwg.mxu0
        %v395 = vpack.c.bf16 %v388, %v386
        %v396 = vpack.c.bf16 %v393, %v391
        %v398 = vsel %vm228, %v395, 0
        %v401 = vsel %vm228, %v396, 0
        %403 = vmatpush.bf16.msra.mxu0 0
        %404 = vmatpush.bf16.msra.mxu0 0
        %405 = vmatpush.bf16.msra.mxu0 0
        %406 = vmatpush.bf16.msra.mxu0 0
        %407 = vmatpush.bf16.msra.mxu0 0
        %408 = vmatpush.bf16.msra.mxu0 0
        %409 = vmatpush.bf16.msra.mxu0 0
        %410 = vmatpush.bf16.msra.mxu0 %v237
        %411 = vmatmul.bf16.gmra.mxu0 %v398
        %v412 = vpop.f32.mrf.mxu0
        %v413 = vadd.f32 0.0, %v412
        %v414 = vpop.f32.mrf.mxu0
        %v415 = vadd.f32 0.0, %v414
        %416 = vmatmul.bf16.gmra.mxu0 %v401
        %v417 = vpop.f32.mrf.mxu0
        %v418 = vadd.f32 0.0, %v417
        %v419 = vpop.f32.mrf.mxu0
        %v420 = vadd.f32 0.0, %v419
        %421 = vdwg.mxu0
        %s422 = scalar_lea.vmem %s166, 96 [#allocation2]
        %423 = vst [vmem:[%s422] sm:$0xff] %v413
        %424 = vst [vmem:[%s422 + $0x8] sm:$0xff] %v415
        %425 = vst [vmem:[%s422 + $0x10] sm:$0xff] %v418
        %426 = vst [vmem:[%s422 + $0x18] sm:$0xff] %v420
        %s427 = sand.u32 %s93, 1
        %s428 = scalar_lea.sflag [#allocation3], %s427
        %s429 = sand.u32 %s93, 1
        %s430 = smul.addr %s429, 128
        %s431 = scalar_lea.vmem [#allocation2], %s430
        // Predicated region
        $region33: #{tpu_custom_call.1} parent=31 // pred_check
          %p432 = pneg %p103
        $region34: #{tpu_custom_call.1} parent=31 // pred_check_branch
          %434 = sbr.rel (%p432) target = $region36
        $region35: #{tpu_custom_call.1} parent=31 // pred_region
          %s435 = smul.u32 4, %s17
          %437 = vsyncadd %s428, 0
          %s438 = smul.addr %s435, 4
          %s439 = smul.addr %s438, 8
          %s440 = scalar_lea.hbm %s3, %s439
          %s441 = sshll.u32 %s431, 4
          %s442 = int_to_ptr.vmem [resolvable:$true] %s441
          %s443 = sshll.u32 %s440, 4
          %s444 = int_to_ptr.hbm [resolvable:$true] %s443
          %449 = dma.vmem_to_hbm [thread:$0]  %s442, 2048, %s444, %s428, 128, 128, 8
        $region36: #{tpu_custom_call.1} parent=31 // pred_fallthru
          _
      $region32: #{tpu_custom_call.1} parent=5 // pred_fallthru
        _
      %p450 = scmp.le.s32.totalorder 2, %s12
      // Predicated region
      $region37: #{tpu_custom_call.1} parent=5 // pred_check
        %p451 = pneg %p450
      $region38: #{tpu_custom_call.1} parent=5 // pred_check_branch
        %453 = sbr.rel (%p451) target = $region40
      $region39: #{tpu_custom_call.1} parent=5 // pred_region
        %s454 = ssub.s32 %s12, 2
        // Predicated region
        $region41: #{tpu_custom_call.1} parent=39 // pred_check
          %p455 = pneg %p109
        $region42: #{tpu_custom_call.1} parent=39 // pred_check_branch
          %457 = sbr.rel (%p455) target = $region44
        $region43: #{tpu_custom_call.1} parent=39 // pred_region
          %s458 = sand.u32 %s94, 1
          %s459 = scalar_lea.sflag [#allocation3], %s458
          %s460 = sand.u32 %s94, 1
          %s461 = smul.addr %s460, 128
          %s462 = scalar_lea.vmem [#allocation2], %s461
          %464 = dma.done %s459, 2048
        $region44: #{tpu_custom_call.1} parent=39 // pred_fallthru
          _
      $region40: #{tpu_custom_call.1} parent=5 // pred_fallthru
        _
    $region6: #{tpu_custom_call.1} parent=1 // loop_footer
      %s16 = sadd.s32 1, %s12
    $region7: #{tpu_custom_call.1} parent=1 // loop_footer_branch
      %11 = sbr.rel target = $region3
    $region8: #{tpu_custom_call.1} parent=1 // loop_exit
      _
    %465 = vsyncpa [#allocation3], 1
    %s466 = scalar_lea.sflag [#allocation3], 1
    %467 = vsyncpa %s466, 1

</llo_original>
